<compile_context>
chip_gen: v7x
topology: tpu7x:2x2x1
jax: 0.10.0
libtpu: 0.0.40
codegen_flags: <defaults>
</compile_context>

<pallas_src>
import functools

import jax
import jax.numpy as jnp
from jax import lax
from jax.experimental import pallas as pl
from jax.experimental.pallas import tpu as pltpu


def attn_head_kernel(x_ref, wq_ref, bq_ref, wk_ref, bk_ref, wv_ref, bv_ref,
                     o_ref, *, B, T, H, scale):
    # Projections on the flattened (B*T, E) input; each is one small MXU push.
    x = x_ref[...]                                                    # (B*T, E)
    q = jnp.dot(x, wq_ref[...], preferred_element_type=jnp.float32) + bq_ref[...]
    k = jnp.dot(x, wk_ref[...], preferred_element_type=jnp.float32) + bk_ref[...]
    v = jnp.dot(x, wv_ref[...], preferred_element_type=jnp.float32) + bv_ref[...]

    # Causal mask, built once (loop-invariant across the unrolled batch loop).
    row = lax.broadcasted_iota(jnp.int32, (T, T), 0)   # query index i
    col = lax.broadcasted_iota(jnp.int32, (T, T), 1)   # key index j
    masked = col > row                                 # future keys are masked

    for b in range(B):  # B is tiny (2): unrolled statically
        q_b = q[b * T:(b + 1) * T, :]
        k_b = k[b * T:(b + 1) * T, :]
        v_b = v[b * T:(b + 1) * T, :]

        # Scores q @ k^T (no explicit transpose of k), scaled by 1/sqrt(H).
        s = lax.dot_general(
            q_b, k_b,
            dimension_numbers=(((1,), (1,)), ((), ())),
            preferred_element_type=jnp.float32) * scale                # (T, T)
        s = jnp.where(masked, -jnp.inf, s)

        # softmax over dim=1 of the (B, T, T) tensor == axis 0 of this tile.
        s = s - jnp.max(s, axis=0, keepdims=True)
        e = jnp.where(masked, 0.0, jnp.exp(s))         # robust: zero masked terms
        p = e / jnp.sum(e, axis=0, keepdims=True)

        out_b = jnp.dot(p, v_b, preferred_element_type=jnp.float32)   # (T, H)
        o_ref[b * T:(b + 1) * T, :] = out_b            # direct (T, H) store


def scaled_self_attention_head(x, wk, bk, wq, bq, wv, bv):
    B, T, E = x.shape
    H = wk.shape[1]
    scale = float(H) ** -0.5

    x_flat = x.reshape(B * T, E)                       # metadata-only reshape
    bq2 = bq.reshape(1, H)
    bk2 = bk.reshape(1, H)
    bv2 = bv.reshape(1, H)

    kernel = functools.partial(attn_head_kernel, B=B, T=T, H=H, scale=scale)
    full = lambda shape: pl.BlockSpec(shape, lambda i: (0,) * len(shape))

    out_flat = pl.pallas_call(
        kernel,
        out_shape=jax.ShapeDtypeStruct((B * T, H), jnp.float32),
        grid=(1,),
        in_specs=[
            full((B * T, E)),   # x
            full((E, H)),       # wq
            full((1, H)),       # bq
            full((E, H)),       # wk
            full((1, H)),       # bk
            full((E, H)),       # wv
            full((1, H)),       # bv
        ],
        out_specs=full((B * T, H)),
        compiler_params=pltpu.CompilerParams(
            dimension_semantics=("arbitrary",)),
    )(x_flat, wq, bq2, wk, bk2, wv, bv2)

    return out_flat.reshape(B, T, H)


def reference(x, wk, bk, wq, bq, wv, bv):
    """Pure-JAX reproduction of the PyTorch forward (for verification)."""
    k = x @ wk + bk
    q = x @ wq + bq
    v = x @ wv + bv
    H = q.shape[-1]
    w = (q @ jnp.swapaxes(k, -2, -1)) * (H ** -0.5)
    T = w.shape[-1]
    tril = jnp.tril(jnp.ones((T, T)))
    w = jnp.where(tril == 0, -jnp.inf, w)
    w = jax.nn.softmax(w, axis=1)  # dim=1, as in the PyTorch module
    return w @ v


if __name__ == "__main__":
    # Small shapes consistent with the module: batch=2, seq=block_size=8,
    # emb_d=32, head_size=16.
    B, T, E, H = 2, 8, 32, 16

    key = jax.random.PRNGKey(0)
    kx, kwk, kbk, kwq, kbq, kwv, kbv = jax.random.split(key, 7)

    x = jax.random.normal(kx, (B, T, E), dtype=jnp.float32)

    # Deterministic PyTorch-Linear-style init: uniform(-1/sqrt(E), 1/sqrt(E)).
    bound = 1.0 / (E ** 0.5)
    init = lambda k, shape: jax.random.uniform(k, shape, jnp.float32, -bound, bound)
    wk, bk = init(kwk, (E, H)), init(kbk, (H,))
    wq, bq = init(kwq, (E, H)), init(kbq, (H,))
    wv, bv = init(kwv, (E, H)), init(kbv, (H,))

    out = scaled_self_attention_head(x, wk, bk, wq, bq, wv, bv)
    out = jax.block_until_ready(out)

    ref = reference(x, wk, bk, wq, bq, wv, bv)
    assert out.shape == (B, T, H)
    assert jnp.allclose(out, ref, atol=1e-5, rtol=1e-5), "mismatch vs reference"

    print("KERNEL_OK")
</pallas_src>

<mosaic_0001>
module attributes {stable_mosaic.version = 11 : i64} {
  func.func @attn_head_kernel(%arg0: i32, %arg1: memref<16x32xf32, #tpu.memory_space<vmem>>, %arg2: memref<32x16xf32, #tpu.memory_space<vmem>>, %arg3: memref<1x16xf32, #tpu.memory_space<vmem>>, %arg4: memref<32x16xf32, #tpu.memory_space<vmem>>, %arg5: memref<1x16xf32, #tpu.memory_space<vmem>>, %arg6: memref<32x16xf32, #tpu.memory_space<vmem>>, %arg7: memref<1x16xf32, #tpu.memory_space<vmem>>, %arg8: memref<16x16xf32, #tpu.memory_space<vmem>>) attributes {dimension_semantics = [#tpu.dimension_semantics<arbitrary>], iteration_bounds = array<i64: 1>, scalar_prefetch = 0 : i64, scratch_operands = 0 : i64, tpu.core_type = #tpu.core_type<tc>, window_params = [{pipeline_mode = #tpu.pipeline_mode<synchronous>, transform_indices = @transform_0, window_bounds = array<i64: 16, 32>}, {pipeline_mode = #tpu.pipeline_mode<synchronous>, transform_indices = @transform_1, window_bounds = array<i64: 32, 16>}, {pipeline_mode = #tpu.pipeline_mode<synchronous>, transform_indices = @transform_2, window_bounds = array<i64: 1, 16>}, {pipeline_mode = #tpu.pipeline_mode<synchronous>, transform_indices = @transform_3, window_bounds = array<i64: 32, 16>}, {pipeline_mode = #tpu.pipeline_mode<synchronous>, transform_indices = @transform_4, window_bounds = array<i64: 1, 16>}, {pipeline_mode = #tpu.pipeline_mode<synchronous>, transform_indices = @transform_5, window_bounds = array<i64: 32, 16>}, {pipeline_mode = #tpu.pipeline_mode<synchronous>, transform_indices = @transform_6, window_bounds = array<i64: 1, 16>}, {pipeline_mode = #tpu.pipeline_mode<synchronous>, transform_indices = @transform_7, window_bounds = array<i64: 16, 16>}]} {
    %c0 = arith.constant 0 : index
    %c0_0 = arith.constant 0 : index
    %0 = vector.load %arg1[%c0, %c0_0] : memref<16x32xf32, #tpu.memory_space<vmem>>, vector<16x32xf32>
    %c0_1 = arith.constant 0 : index
    %c0_2 = arith.constant 0 : index
    %1 = vector.load %arg2[%c0_1, %c0_2] : memref<32x16xf32, #tpu.memory_space<vmem>>, vector<32x16xf32>
    %cst = arith.constant dense<0.000000e+00> : vector<16x16xf32>
    %2 = tpu.matmul %0, %1, %cst {dimension_numbers = #tpu.dot_dimension_numbers<[1], [0], [0], [1], [0, 0, 1, 1], [], []>} : vector<16x32xf32>, vector<32x16xf32>, vector<16x16xf32> -> vector<16x16xf32>
    %c0_3 = arith.constant 0 : index
    %c0_4 = arith.constant 0 : index
    %3 = vector.load %arg3[%c0_3, %c0_4] : memref<1x16xf32, #tpu.memory_space<vmem>>, vector<1x16xf32>
    %4 = vector.broadcast %3 : vector<1x16xf32> to vector<16x16xf32>
    %5 = arith.addf %2, %4 : vector<16x16xf32>
    %c0_5 = arith.constant 0 : index
    %c0_6 = arith.constant 0 : index
    %6 = vector.load %arg4[%c0_5, %c0_6] : memref<32x16xf32, #tpu.memory_space<vmem>>, vector<32x16xf32>
    %cst_7 = arith.constant dense<0.000000e+00> : vector<16x16xf32>
    %7 = tpu.matmul %0, %6, %cst_7 {dimension_numbers = #tpu.dot_dimension_numbers<[1], [0], [0], [1], [0, 0, 1, 1], [], []>} : vector<16x32xf32>, vector<32x16xf32>, vector<16x16xf32> -> vector<16x16xf32>
    %c0_8 = arith.constant 0 : index
    %c0_9 = arith.constant 0 : index
    %8 = vector.load %arg5[%c0_8, %c0_9] : memref<1x16xf32, #tpu.memory_space<vmem>>, vector<1x16xf32>
    %9 = vector.broadcast %8 : vector<1x16xf32> to vector<16x16xf32>
    %10 = arith.addf %7, %9 : vector<16x16xf32>
    %c0_10 = arith.constant 0 : index
    %c0_11 = arith.constant 0 : index
    %11 = vector.load %arg6[%c0_10, %c0_11] : memref<32x16xf32, #tpu.memory_space<vmem>>, vector<32x16xf32>
    %cst_12 = arith.constant dense<0.000000e+00> : vector<16x16xf32>
    %12 = tpu.matmul %0, %11, %cst_12 {dimension_numbers = #tpu.dot_dimension_numbers<[1], [0], [0], [1], [0, 0, 1, 1], [], []>} : vector<16x32xf32>, vector<32x16xf32>, vector<16x16xf32> -> vector<16x16xf32>
    %c0_13 = arith.constant 0 : index
    %c0_14 = arith.constant 0 : index
    %13 = vector.load %arg7[%c0_13, %c0_14] : memref<1x16xf32, #tpu.memory_space<vmem>>, vector<1x16xf32>
    %14 = vector.broadcast %13 : vector<1x16xf32> to vector<16x16xf32>
    %15 = arith.addf %12, %14 : vector<16x16xf32>
    %16 = tpu.iota {dimensions = array<i32: 0>} : vector<8x8xi32>
    %17 = tpu.iota {dimensions = array<i32: 1>} : vector<8x8xi32>
    %18 = arith.cmpi sgt, %17, %16 : vector<8x8xi32>
    %19 = vector.extract_strided_slice %5 {offsets = [0, 0], sizes = [8, 16], strides = [1, 1]} : vector<16x16xf32> to vector<8x16xf32>
    %20 = vector.extract_strided_slice %10 {offsets = [0, 0], sizes = [8, 16], strides = [1, 1]} : vector<16x16xf32> to vector<8x16xf32>
    %21 = vector.extract_strided_slice %15 {offsets = [0, 0], sizes = [8, 16], strides = [1, 1]} : vector<16x16xf32> to vector<8x16xf32>
    %cst_15 = arith.constant dense<0.000000e+00> : vector<8x8xf32>
    %22 = tpu.matmul %19, %20, %cst_15 {dimension_numbers = #tpu.dot_dimension_numbers<[1], [1], [0], [0], [0, 0, 1, 0], [], []>} : vector<8x16xf32>, vector<8x16xf32>, vector<8x8xf32> -> vector<8x8xf32>
    %cst_16 = arith.constant 2.500000e-01 : f32
    %23 = vector.broadcast %cst_16 : f32 to vector<8x8xf32>
    %24 = arith.mulf %22, %23 : vector<8x8xf32>
    %cst_17 = arith.constant 0xFF800000 : f32
    %25 = vector.broadcast %cst_17 : f32 to vector<8x8xf32>
    %26 = arith.select %18, %25, %24 : vector<8x8xi1>, vector<8x8xf32>
    %cst_18 = arith.constant dense<0xFF800000> : vector<8xf32>
    %27 = vector.multi_reduction <maximumf>, %26, %cst_18 [0] : vector<8x8xf32> to vector<8xf32>
    %28 = vector.shape_cast %27 : vector<8xf32> to vector<1x8xf32>
    %29 = vector.broadcast %28 : vector<1x8xf32> to vector<8x8xf32>
    %30 = arith.subf %26, %29 : vector<8x8xf32>
    %31 = math.exp %30 : vector<8x8xf32>
    %cst_19 = arith.constant 0.000000e+00 : f32
    %32 = vector.broadcast %cst_19 : f32 to vector<8x8xf32>
    %33 = arith.select %18, %32, %31 : vector<8x8xi1>, vector<8x8xf32>
    %cst_20 = arith.constant dense<0.000000e+00> : vector<8xf32>
    %34 = vector.multi_reduction <add>, %33, %cst_20 [0] : vector<8x8xf32> to vector<8xf32>
    %35 = vector.shape_cast %34 : vector<8xf32> to vector<1x8xf32>
    %36 = vector.broadcast %35 : vector<1x8xf32> to vector<8x8xf32>
    %37 = arith.divf %33, %36 : vector<8x8xf32>
    %cst_21 = arith.constant dense<0.000000e+00> : vector<8x16xf32>
    %38 = tpu.matmul %37, %21, %cst_21 {dimension_numbers = #tpu.dot_dimension_numbers<[1], [0], [0], [1], [0, 0, 1, 1], [], []>} : vector<8x8xf32>, vector<8x16xf32>, vector<8x16xf32> -> vector<8x16xf32>
    %c0_22 = arith.constant 0 : index
    %c0_23 = arith.constant 0 : index
    %39 = vector.load %arg8[%c0_22, %c0_23] : memref<16x16xf32, #tpu.memory_space<vmem>>, vector<8x16xf32>
    tpu.vector_store %arg8[%c0_22, %c0_23], %38 {strides = array<i32>} : memref<16x16xf32, #tpu.memory_space<vmem>>, vector<8x16xf32>,
    %40 = vector.extract_strided_slice %5 {offsets = [8, 0], sizes = [8, 16], strides = [1, 1]} : vector<16x16xf32> to vector<8x16xf32>
    %41 = vector.extract_strided_slice %10 {offsets = [8, 0], sizes = [8, 16], strides = [1, 1]} : vector<16x16xf32> to vector<8x16xf32>
    %42 = vector.extract_strided_slice %15 {offsets = [8, 0], sizes = [8, 16], strides = [1, 1]} : vector<16x16xf32> to vector<8x16xf32>
    %cst_24 = arith.constant dense<0.000000e+00> : vector<8x8xf32>
    %43 = tpu.matmul %40, %41, %cst_24 {dimension_numbers = #tpu.dot_dimension_numbers<[1], [1], [0], [0], [0, 0, 1, 0], [], []>} : vector<8x16xf32>, vector<8x16xf32>, vector<8x8xf32> -> vector<8x8xf32>
    %cst_25 = arith.constant 2.500000e-01 : f32
    %44 = vector.broadcast %cst_25 : f32 to vector<8x8xf32>
    %45 = arith.mulf %43, %44 : vector<8x8xf32>
    %cst_26 = arith.constant 0xFF800000 : f32
    %46 = vector.broadcast %cst_26 : f32 to vector<8x8xf32>
    %47 = arith.select %18, %46, %45 : vector<8x8xi1>, vector<8x8xf32>
    %cst_27 = arith.constant dense<0xFF800000> : vector<8xf32>
    %48 = vector.multi_reduction <maximumf>, %47, %cst_27 [0] : vector<8x8xf32> to vector<8xf32>
    %49 = vector.shape_cast %48 : vector<8xf32> to vector<1x8xf32>
    %50 = vector.broadcast %49 : vector<1x8xf32> to vector<8x8xf32>
    %51 = arith.subf %47, %50 : vector<8x8xf32>
    %52 = math.exp %51 : vector<8x8xf32>
    %cst_28 = arith.constant 0.000000e+00 : f32
    %53 = vector.broadcast %cst_28 : f32 to vector<8x8xf32>
    %54 = arith.select %18, %53, %52 : vector<8x8xi1>, vector<8x8xf32>
    %cst_29 = arith.constant dense<0.000000e+00> : vector<8xf32>
    %55 = vector.multi_reduction <add>, %54, %cst_29 [0] : vector<8x8xf32> to vector<8xf32>
    %56 = vector.shape_cast %55 : vector<8xf32> to vector<1x8xf32>
    %57 = vector.broadcast %56 : vector<1x8xf32> to vector<8x8xf32>
    %58 = arith.divf %54, %57 : vector<8x8xf32>
    %cst_30 = arith.constant dense<0.000000e+00> : vector<8x16xf32>
    %59 = tpu.matmul %58, %42, %cst_30 {dimension_numbers = #tpu.dot_dimension_numbers<[1], [0], [0], [1], [0, 0, 1, 1], [], []>} : vector<8x8xf32>, vector<8x16xf32>, vector<8x16xf32> -> vector<8x16xf32>
    %c8 = arith.constant 8 : index
    %c0_31 = arith.constant 0 : index
    %60 = vector.load %arg8[%c8, %c0_31] : memref<16x16xf32, #tpu.memory_space<vmem>>, vector<8x16xf32>
    tpu.vector_store %arg8[%c8, %c0_31], %59 {strides = array<i32>} : memref<16x16xf32, #tpu.memory_space<vmem>>, vector<8x16xf32>,
    return
  }
  func.func @transform_0(%arg0: i32) -> (i32, i32) {
    %c0_i32 = arith.constant 0 : i32
    %c0_i32_0 = arith.constant 0 : i32
    %c0_i32_1 = arith.constant 0 : i32
    return %c0_i32, %c0_i32_0 : i32, i32
  }
  func.func @transform_1(%arg0: i32) -> (i32, i32) {
    %c0_i32 = arith.constant 0 : i32
    %c0_i32_0 = arith.constant 0 : i32
    %c0_i32_1 = arith.constant 0 : i32
    return %c0_i32, %c0_i32_0 : i32, i32
  }
  func.func @transform_2(%arg0: i32) -> (i32, i32) {
    %c0_i32 = arith.constant 0 : i32
    %c0_i32_0 = arith.constant 0 : i32
    %c0_i32_1 = arith.constant 0 : i32
    return %c0_i32, %c0_i32_0 : i32, i32
  }
  func.func @transform_3(%arg0: i32) -> (i32, i32) {
    %c0_i32 = arith.constant 0 : i32
    %c0_i32_0 = arith.constant 0 : i32
    %c0_i32_1 = arith.constant 0 : i32
    return %c0_i32, %c0_i32_0 : i32, i32
  }
  func.func @transform_4(%arg0: i32) -> (i32, i32) {
    %c0_i32 = arith.constant 0 : i32
    %c0_i32_0 = arith.constant 0 : i32
    %c0_i32_1 = arith.constant 0 : i32
    return %c0_i32, %c0_i32_0 : i32, i32
  }
  func.func @transform_5(%arg0: i32) -> (i32, i32) {
    %c0_i32 = arith.constant 0 : i32
    %c0_i32_0 = arith.constant 0 : i32
    %c0_i32_1 = arith.constant 0 : i32
    return %c0_i32, %c0_i32_0 : i32, i32
  }
  func.func @transform_6(%arg0: i32) -> (i32, i32) {
    %c0_i32 = arith.constant 0 : i32
    %c0_i32_0 = arith.constant 0 : i32
    %c0_i32_1 = arith.constant 0 : i32
    return %c0_i32, %c0_i32_0 : i32, i32
  }
  func.func @transform_7(%arg0: i32) -> (i32, i32) {
    %c0_i32 = arith.constant 0 : i32
    %c0_i32_0 = arith.constant 0 : i32
    %c0_i32_1 = arith.constant 0 : i32
    return %c0_i32, %c0_i32_0 : i32, i32
  }
}

</mosaic_0001>

<llo_original>
// kernel: tpu_custom_call.1
$region0: #{tpu_custom_call.1}
  #allocation0 [shape = 'u32[]', space=smem, size = 0x4, offset = 0x4, fixed_abs, tag = 'smem constant byte address 0x4 - core index']
  #allocation1 [shape = 'u32[144,128]{1,0:T(1,128)}', space=vmem, size = 0x12000, scoped, tag = 'internal scratch']
  %s0 = inlined_call_operand.vmem [shape: f32[16,32], index: 0, kind: input, shape index: {}]
  %s1 = inlined_call_operand.vmem [shape: f32[32,16], index: 1, kind: input, shape index: {}]
  %s2 = inlined_call_operand.vmem [shape: f32[1,16], index: 2, kind: input, shape index: {}]
  %s3 = inlined_call_operand.vmem [shape: f32[32,16], index: 3, kind: input, shape index: {}]
  %s4 = inlined_call_operand.vmem [shape: f32[1,16], index: 4, kind: input, shape index: {}]
  %s5 = inlined_call_operand.vmem [shape: f32[32,16], index: 5, kind: input, shape index: {}]
  %s6 = inlined_call_operand.vmem [shape: f32[1,16], index: 6, kind: input, shape index: {}]
  %s7 = inlined_call_operand.hbm [shape: f32[16,16], index: 7, kind: output, shape index: {}]
  %s8 = sld [smem:[#allocation0]]
  $region38: #{tpu_custom_call.1} parent=0
    _
  %s10 = ssub.s32 1, %s8
  %s11 = scalar_select 0, %s10, %s8
  $region1: #{tpu_custom_call.1} parent=0
    #allocation2 [shape = 'u8[8192]{0}', space=vmem, size = 0x2000, scoped, tag = 'output window, operand 0, single buffered']
    #allocation3 [shape = 's32[1]{0}', space=sflag, size = 0x4, scoped, tag = 'scoped memory for tpu_custom_call.1']
    %12 = vsyncpa [#allocation3], 0
    // Predicated region
    $region2: #{tpu_custom_call.1} parent=1 // pred_check
      _
    $region3: #{tpu_custom_call.1} parent=1 // pred_check_branch
      %14 = sbr.rel (0) target = $region5
    $region4: #{tpu_custom_call.1} parent=1 // pred_region
      _
    $region5: #{tpu_custom_call.1} parent=1 // pred_fallthru
      _
    // Predicated region
    $region6: #{tpu_custom_call.1} parent=1 // pred_check
      _
    $region7: #{tpu_custom_call.1} parent=1 // pred_check_branch
      %16 = sbr.rel (0) target = $region9
    $region8: #{tpu_custom_call.1} parent=1 // pred_region
      _
    $region9: #{tpu_custom_call.1} parent=1 // pred_fallthru
      _
    // Predicated region
    $region10: #{tpu_custom_call.1} parent=1 // pred_check
      _
    $region11: #{tpu_custom_call.1} parent=1 // pred_check_branch
      %18 = sbr.rel (0) target = $region13
    $region12: #{tpu_custom_call.1} parent=1 // pred_region
      _
    $region13: #{tpu_custom_call.1} parent=1 // pred_fallthru
      _
    // Predicated region
    $region14: #{tpu_custom_call.1} parent=1 // pred_check
      _
    $region15: #{tpu_custom_call.1} parent=1 // pred_check_branch
      %20 = sbr.rel (0) target = $region17
    $region16: #{tpu_custom_call.1} parent=1 // pred_region
      _
    $region17: #{tpu_custom_call.1} parent=1 // pred_fallthru
      _
    // Predicated region
    $region18: #{tpu_custom_call.1} parent=1 // pred_check
      _
    $region19: #{tpu_custom_call.1} parent=1 // pred_check_branch
      %22 = sbr.rel (0) target = $region21
    $region20: #{tpu_custom_call.1} parent=1 // pred_region
      _
    $region21: #{tpu_custom_call.1} parent=1 // pred_fallthru
      _
    // Predicated region
    $region22: #{tpu_custom_call.1} parent=1 // pred_check
      _
    $region23: #{tpu_custom_call.1} parent=1 // pred_check_branch
      %24 = sbr.rel (0) target = $region25
    $region24: #{tpu_custom_call.1} parent=1 // pred_region
      _
    $region25: #{tpu_custom_call.1} parent=1 // pred_fallthru
      _
    // Predicated region
    $region26: #{tpu_custom_call.1} parent=1 // pred_check
      _
    $region27: #{tpu_custom_call.1} parent=1 // pred_check_branch
      %26 = sbr.rel (0) target = $region29
    $region28: #{tpu_custom_call.1} parent=1 // pred_region
      _
    $region29: #{tpu_custom_call.1} parent=1 // pred_fallthru
      _
    %v27 = vld [vmem:[%s0] sm:$0xff]
    %v28 = vld [vmem:[%s0 + $0x8] sm:$0xff]
    %v29 = vld [vmem:[%s1] sm:$0xff]
    %v30 = vld [vmem:[%s1 + $0x8] sm:$0xff]
    %v31 = vld [vmem:[%s1 + $0x10] sm:$0xff]
    %v32 = vld [vmem:[%s1 + $0x18] sm:$0xff]
    %v33 = vld [vmem:[%s2] sm:$0x1]
    %v35 = vlaneseq
    %v36 = vshrl.u32 %v35, 7
    %v37 = vsub.s32 0, %v36
    %v38 = vrot.slane %v33, %v37
    %vm40 = vcmask 261120
    %v42 = vsel %vm40, %v27, 0
    %v45 = vsel %vm40, %v28, 0
    %47 = vmatprep.subr.mxu0 0.0
    %48 = vmatpush1.msra.mxu0 %v29
    %49 = vmatprep.subr.mxu0 0.0
    %50 = vmatpush1.msra.mxu0 %v30
    %51 = vmatprep.subr.mxu0 0.0
    %52 = vmatpush1.msra.mxu0 %v31
    %53 = vmatprep.subr.mxu0 0.0
    %54 = vmatpush1.msra.mxu0 %v32
    %55 = vmatprep.subr.mxu0 0.0
    %56 = vmatpush1.msra.mxu0 0.0
    %57 = vmatprep.subr.mxu0 0.0
    %58 = vmatpush1.msra.mxu0 0.0
    %59 = vmatprep.subr.mxu0 0.0
    %60 = vmatpush1.msra.mxu0 0.0
    %61 = vmatprep.subr.mxu0 0.0
    %62 = vmatpush1.msra.mxu0 0.0
    %63 = vmatprep.subr.mxu0 0.0
    %64 = vmatpush1.msra.mxu0 0.0
    %65 = vmatprep.subr.mxu0 0.0
    %66 = vmatpush1.msra.mxu0 0.0
    %67 = vmatprep.subr.mxu0 0.0
    %68 = vmatpush1.msra.mxu0 0.0
    %69 = vmatprep.subr.mxu0 0.0
    %70 = vmatpush1.msra.mxu0 0.0
    %71 = vmatprep.subr.mxu0 0.0
    %72 = vmatpush1.msra.mxu0 0.0
    %73 = vmatprep.subr.mxu0 0.0
    %74 = vmatpush1.msra.mxu0 0.0
    %75 = vmatprep.subr.mxu0 0.0
    %76 = vmatpush1.msra.mxu0 0.0
    %77 = vmatprep.subr.mxu0 0.0
    %78 = vmatpush1.msra.mxu0 0.0
    %79 = vmatprep.subr.mxu0 0.0
    %80 = vmatpush1.msra.mxu0 0.0
    %81 = vmatprep.subr.mxu0 0.0
    %82 = vmatpush1.msra.mxu0 0.0
    %83 = vmatprep.subr.mxu0 0.0
    %84 = vmatpush1.msra.mxu0 0.0
    %85 = vmatprep.subr.mxu0 0.0
    %86 = vmatpush1.msra.mxu0 0.0
    %87 = vmatprep.subr.mxu0 0.0
    %88 = vmatpush1.msra.mxu0 0.0
    %89 = vmatprep.subr.mxu0 0.0
    %90 = vmatpush1.msra.mxu0 0.0
    %91 = vmatprep.subr.mxu0 0.0
    %92 = vmatpush1.msra.mxu0 0.0
    %93 = vmatprep.subr.mxu0 0.0
    %94 = vmatpush1.msra.mxu0 0.0
    %95 = vmatprep.subr.mxu0 0.0
    %96 = vmatpush1.msra.mxu0 0.0
    %97 = vmatprep.subr.mxu0 0.0
    %98 = vmatpush1.msra.mxu0 0.0
    %99 = vmatprep.subr.mxu0 0.0
    %100 = vmatpush1.msra.mxu0 0.0
    %101 = vmatprep.subr.mxu0 0.0
    %102 = vmatpush1.msra.mxu0 0.0
    %103 = vmatprep.subr.mxu0 0.0
    %104 = vmatpush1.msra.mxu0 0.0
    %105 = vmatprep.subr.mxu0 0.0
    %106 = vmatpush1.msra.mxu0 0.0
    %107 = vmatprep.subr.mxu0 0.0
    %108 = vmatpush1.msra.mxu0 0.0
    %109 = vmatprep.subr.mxu0 0.0
    %110 = vmatpush1.msra.mxu0 0.0
    %111 = vmatprep.mubr.f32.mxu0 0.0
    %112 = vmatmul.mubr.f32.gmra.mrb[0].mxu0 %v42
    %v113 = vpop.f32.mrb[0].mxu0
    %v114 = vadd.f32 %v38, %v113
    %v115 = vpop.f32.mrb[0].mxu0
    %116 = vmatprep.mubr.f32.mxu0 0.0
    %117 = vmatmul.mubr.f32.gmra.mrb[0].mxu0 %v45
    %v118 = vpop.f32.mrb[0].mxu0
    %v119 = vadd.f32 %v38, %v118
    %v120 = vpop.f32.mrb[0].mxu0
    %121 = vdwg.mxu0
    %v122 = vld [vmem:[%s3] sm:$0xff]
    %v123 = vld [vmem:[%s3 + $0x8] sm:$0xff]
    %v124 = vld [vmem:[%s3 + $0x10] sm:$0xff]
    %v125 = vld [vmem:[%s3 + $0x18] sm:$0xff]
    %v126 = vld [vmem:[%s4] sm:$0x1]
    %v128 = vlaneseq
    %v129 = vshrl.u32 %v128, 7
    %v130 = vsub.s32 0, %v129
    %v131 = vrot.slane %v126, %v130
    %133 = vmatprep.subr.mxu0 0.0
    %134 = vmatpush1.msra.mxu0 %v122
    %135 = vmatprep.subr.mxu0 0.0
    %136 = vmatpush1.msra.mxu0 %v123
    %137 = vmatprep.subr.mxu0 0.0
    %138 = vmatpush1.msra.mxu0 %v124
    %139 = vmatprep.subr.mxu0 0.0
    %140 = vmatpush1.msra.mxu0 %v125
    %141 = vmatprep.subr.mxu0 0.0
    %142 = vmatpush1.msra.mxu0 0.0
    %143 = vmatprep.subr.mxu0 0.0
    %144 = vmatpush1.msra.mxu0 0.0
    %145 = vmatprep.subr.mxu0 0.0
    %146 = vmatpush1.msra.mxu0 0.0
    %147 = vmatprep.subr.mxu0 0.0
    %148 = vmatpush1.msra.mxu0 0.0
    %149 = vmatprep.subr.mxu0 0.0
    %150 = vmatpush1.msra.mxu0 0.0
    %151 = vmatprep.subr.mxu0 0.0
    %152 = vmatpush1.msra.mxu0 0.0
    %153 = vmatprep.subr.mxu0 0.0
    %154 = vmatpush1.msra.mxu0 0.0
    %155 = vmatprep.subr.mxu0 0.0
    %156 = vmatpush1.msra.mxu0 0.0
    %157 = vmatprep.subr.mxu0 0.0
    %158 = vmatpush1.msra.mxu0 0.0
    %159 = vmatprep.subr.mxu0 0.0
    %160 = vmatpush1.msra.mxu0 0.0
    %161 = vmatprep.subr.mxu0 0.0
    %162 = vmatpush1.msra.mxu0 0.0
    %163 = vmatprep.subr.mxu0 0.0
    %164 = vmatpush1.msra.mxu0 0.0
    %165 = vmatprep.subr.mxu0 0.0
    %166 = vmatpush1.msra.mxu0 0.0
    %167 = vmatprep.subr.mxu0 0.0
    %168 = vmatpush1.msra.mxu0 0.0
    %169 = vmatprep.subr.mxu0 0.0
    %170 = vmatpush1.msra.mxu0 0.0
    %171 = vmatprep.subr.mxu0 0.0
    %172 = vmatpush1.msra.mxu0 0.0
    %173 = vmatprep.subr.mxu0 0.0
    %174 = vmatpush1.msra.mxu0 0.0
    %175 = vmatprep.subr.mxu0 0.0
    %176 = vmatpush1.msra.mxu0 0.0
    %177 = vmatprep.subr.mxu0 0.0
    %178 = vmatpush1.msra.mxu0 0.0
    %179 = vmatprep.subr.mxu0 0.0
    %180 = vmatpush1.msra.mxu0 0.0
    %181 = vmatprep.subr.mxu0 0.0
    %182 = vmatpush1.msra.mxu0 0.0
    %183 = vmatprep.subr.mxu0 0.0
    %184 = vmatpush1.msra.mxu0 0.0
    %185 = vmatprep.subr.mxu0 0.0
    %186 = vmatpush1.msra.mxu0 0.0
    %187 = vmatprep.subr.mxu0 0.0
    %188 = vmatpush1.msra.mxu0 0.0
    %189 = vmatprep.subr.mxu0 0.0
    %190 = vmatpush1.msra.mxu0 0.0
    %191 = vmatprep.subr.mxu0 0.0
    %192 = vmatpush1.msra.mxu0 0.0
    %193 = vmatprep.subr.mxu0 0.0
    %194 = vmatpush1.msra.mxu0 0.0
    %195 = vmatprep.subr.mxu0 0.0
    %196 = vmatpush1.msra.mxu0 0.0
    %197 = vmatprep.mubr.f32.mxu0 0.0
    %198 = vmatmul.mubr.f32.gmra.mrb[0].mxu0 %v42
    %v199 = vpop.f32.mrb[0].mxu0
    %v200 = vadd.f32 %v131, %v199
    %v201 = vpop.f32.mrb[0].mxu0
    %202 = vmatprep.mubr.f32.mxu0 0.0
    %203 = vmatmul.mubr.f32.gmra.mrb[0].mxu0 %v45
    %v204 = vpop.f32.mrb[0].mxu0
    %v205 = vadd.f32 %v131, %v204
    %v206 = vpop.f32.mrb[0].mxu0
    %207 = vdwg.mxu0
    %v208 = vld [vmem:[%s5] sm:$0xff]
    %v209 = vld [vmem:[%s5 + $0x8] sm:$0xff]
    %v210 = vld [vmem:[%s5 + $0x10] sm:$0xff]
    %v211 = vld [vmem:[%s5 + $0x18] sm:$0xff]
    %v212 = vld [vmem:[%s6] sm:$0x1]
    %v214 = vlaneseq
    %v215 = vshrl.u32 %v214, 7
    %v216 = vsub.s32 0, %v215
    %v217 = vrot.slane %v212, %v216
    %219 = vmatprep.subr.mxu0 0.0
    %220 = vmatpush1.msra.mxu0 %v208
    %221 = vmatprep.subr.mxu0 0.0
    %222 = vmatpush1.msra.mxu0 %v209
    %223 = vmatprep.subr.mxu0 0.0
    %224 = vmatpush1.msra.mxu0 %v210
    %225 = vmatprep.subr.mxu0 0.0
    %226 = vmatpush1.msra.mxu0 %v211
    %227 = vmatprep.subr.mxu0 0.0
    %228 = vmatpush1.msra.mxu0 0.0
    %229 = vmatprep.subr.mxu0 0.0
    %230 = vmatpush1.msra.mxu0 0.0
    %231 = vmatprep.subr.mxu0 0.0
    %232 = vmatpush1.msra.mxu0 0.0
    %233 = vmatprep.subr.mxu0 0.0
    %234 = vmatpush1.msra.mxu0 0.0
    %235 = vmatprep.subr.mxu0 0.0
    %236 = vmatpush1.msra.mxu0 0.0
    %237 = vmatprep.subr.mxu0 0.0
    %238 = vmatpush1.msra.mxu0 0.0
    %239 = vmatprep.subr.mxu0 0.0
    %240 = vmatpush1.msra.mxu0 0.0
    %241 = vmatprep.subr.mxu0 0.0
    %242 = vmatpush1.msra.mxu0 0.0
    %243 = vmatprep.subr.mxu0 0.0
    %244 = vmatpush1.msra.mxu0 0.0
    %245 = vmatprep.subr.mxu0 0.0
    %246 = vmatpush1.msra.mxu0 0.0
    %247 = vmatprep.subr.mxu0 0.0
    %248 = vmatpush1.msra.mxu0 0.0
    %249 = vmatprep.subr.mxu0 0.0
    %250 = vmatpush1.msra.mxu0 0.0
    %251 = vmatprep.subr.mxu0 0.0
    %252 = vmatpush1.msra.mxu0 0.0
    %253 = vmatprep.subr.mxu0 0.0
    %254 = vmatpush1.msra.mxu0 0.0
    %255 = vmatprep.subr.mxu0 0.0
    %256 = vmatpush1.msra.mxu0 0.0
    %257 = vmatprep.subr.mxu0 0.0
    %258 = vmatpush1.msra.mxu0 0.0
    %259 = vmatprep.subr.mxu0 0.0
    %260 = vmatpush1.msra.mxu0 0.0
    %261 = vmatprep.subr.mxu0 0.0
    %262 = vmatpush1.msra.mxu0 0.0
    %263 = vmatprep.subr.mxu0 0.0
    %264 = vmatpush1.msra.mxu0 0.0
    %265 = vmatprep.subr.mxu0 0.0
    %266 = vmatpush1.msra.mxu0 0.0
    %267 = vmatprep.subr.mxu0 0.0
    %268 = vmatpush1.msra.mxu0 0.0
    %269 = vmatprep.subr.mxu0 0.0
    %270 = vmatpush1.msra.mxu0 0.0
    %271 = vmatprep.subr.mxu0 0.0
    %272 = vmatpush1.msra.mxu0 0.0
    %273 = vmatprep.subr.mxu0 0.0
    %274 = vmatpush1.msra.mxu0 0.0
    %275 = vmatprep.subr.mxu0 0.0
    %276 = vmatpush1.msra.mxu0 0.0
    %277 = vmatprep.subr.mxu0 0.0
    %278 = vmatpush1.msra.mxu0 0.0
    %279 = vmatprep.subr.mxu0 0.0
    %280 = vmatpush1.msra.mxu0 0.0
    %281 = vmatprep.subr.mxu0 0.0
    %282 = vmatpush1.msra.mxu0 0.0
    %283 = vmatprep.mubr.f32.mxu0 0.0
    %284 = vmatmul.mubr.f32.gmra.mrb[0].mxu0 %v42
    %v285 = vpop.f32.mrb[0].mxu0
    %v286 = vadd.f32 %v217, %v285
    %v287 = vpop.f32.mrb[0].mxu0
    %288 = vmatprep.mubr.f32.mxu0 0.0
    %289 = vmatmul.mubr.f32.gmra.mrb[0].mxu0 %v45
    %v290 = vpop.f32.mrb[0].mxu0
    %v291 = vadd.f32 %v217, %v290
    %v292 = vpop.f32.mrb[0].mxu0
    %293 = vdwg.mxu0
    %v294 = vlaneseq
    %v295 = vshrl.u32 %v294, 7
    %v296 = vlaneseq
    %v297 = vand.u32 %v296, 127
    %vm298 = vcmp.gt.s32.totalorder %v297, %v295
    %vm299 = vcmask 130048
    %v301 = vsel %vm299, %v114, 0
    %v304 = vsel %vm299, %v200, 0
    %306 = vmatprep.subr.mxu0 0.0
    %307 = vmatpush1.xpose.msra.mxu0 %v304
    %308 = vmatprep.subr.mxu0 0.0
    %309 = vmatpush1.xpose.msra.mxu0 0.0
    %310 = vmatprep.subr.mxu0 0.0
    %311 = vmatpush1.xpose.msra.mxu0 0.0
    %312 = vmatprep.subr.mxu0 0.0
    %313 = vmatpush1.xpose.msra.mxu0 0.0
    %314 = vmatprep.subr.mxu0 0.0
    %315 = vmatpush1.xpose.msra.mxu0 0.0
    %316 = vmatprep.subr.mxu0 0.0
    %317 = vmatpush1.xpose.msra.mxu0 0.0
    %318 = vmatprep.subr.mxu0 0.0
    %319 = vmatpush1.xpose.msra.mxu0 0.0
    %320 = vmatprep.subr.mxu0 0.0
    %321 = vmatpush1.xpose.msra.mxu0 0.0
    %322 = vmatprep.subr.mxu0 0.0
    %323 = vmatpush1.xpose.msra.mxu0 0.0
    %324 = vmatprep.subr.mxu0 0.0
    %325 = vmatpush1.xpose.msra.mxu0 0.0
    %326 = vmatprep.subr.mxu0 0.0
    %327 = vmatpush1.xpose.msra.mxu0 0.0
    %328 = vmatprep.subr.mxu0 0.0
    %329 = vmatpush1.xpose.msra.mxu0 0.0
    %330 = vmatprep.subr.mxu0 0.0
    %331 = vmatpush1.xpose.msra.mxu0 0.0
    %332 = vmatprep.subr.mxu0 0.0
    %333 = vmatpush1.xpose.msra.mxu0 0.0
    %334 = vmatprep.subr.mxu0 0.0
    %335 = vmatpush1.xpose.msra.mxu0 0.0
    %336 = vmatprep.subr.mxu0 0.0
    %337 = vmatpush1.xpose.msra.mxu0 0.0
    %338 = vmatprep.subr.mxu0 0.0
    %339 = vmatpush1.xpose.msra.mxu0 0.0
    %340 = vmatprep.subr.mxu0 0.0
    %341 = vmatpush1.xpose.msra.mxu0 0.0
    %342 = vmatprep.subr.mxu0 0.0
    %343 = vmatpush1.xpose.msra.mxu0 0.0
    %344 = vmatprep.subr.mxu0 0.0
    %345 = vmatpush1.xpose.msra.mxu0 0.0
    %346 = vmatprep.subr.mxu0 0.0
    %347 = vmatpush1.xpose.msra.mxu0 0.0
    %348 = vmatprep.subr.mxu0 0.0
    %349 = vmatpush1.xpose.msra.mxu0 0.0
    %350 = vmatprep.subr.mxu0 0.0
    %351 = vmatpush1.xpose.msra.mxu0 0.0
    %352 = vmatprep.subr.mxu0 0.0
    %353 = vmatpush1.xpose.msra.mxu0 0.0
    %354 = vmatprep.subr.mxu0 0.0
    %355 = vmatpush1.xpose.msra.mxu0 0.0
    %356 = vmatprep.subr.mxu0 0.0
    %357 = vmatpush1.xpose.msra.mxu0 0.0
    %358 = vmatprep.subr.mxu0 0.0
    %359 = vmatpush1.xpose.msra.mxu0 0.0
    %360 = vmatprep.subr.mxu0 0.0
    %361 = vmatpush1.xpose.msra.mxu0 0.0
    %362 = vmatprep.subr.mxu0 0.0
    %363 = vmatpush1.xpose.msra.mxu0 0.0
    %364 = vmatprep.subr.mxu0 0.0
    %365 = vmatpush1.xpose.msra.mxu0 0.0
    %366 = vmatprep.subr.mxu0 0.0
    %367 = vmatpush1.xpose.msra.mxu0 0.0
    %368 = vmatprep.subr.mxu0 0.0
    %369 = vmatpush1.xpose.msra.mxu0 0.0
    %370 = vmatprep.mubr.f32.mxu0 0.0
    %371 = vmatmul.mubr.f32.gmra.mrb[0].mxu0 %v301
    %v372 = vpop.f32.mrb[0].mxu0
    %v373 = vadd.f32 0.0, %v372
    %v374 = vpop.f32.mrb[0].mxu0
    %375 = vdwg.mxu0
    %v376 = vmul.f32 %v373, 0.25
    %v377 = vsel %vm298, -inf, %v376
    %vm378 = vcmask 64512
    %v379 = vsel %vm378, %v377, -inf
    %v380 = vrot.slane %v379, 4
    %v381 = vmax.f32 %v379, %v380
    %v382 = vrot.slane %v381, 2
    %v383 = vmax.f32 %v381, %v382
    %v384 = vrot.slane %v383, 1
    %v385 = vmax.f32 %v383, %v384
    %v386 = vsub.f32 %v377, %v385
    %v387 = vmul.f32 %v386, 1.442695
    %v388 = vpow.pop %v387
    %v389 = vsel %vm298, 0.0, %v388
    %v390 = vsel %vm378, %v389, 0.0
    %v391 = vrot.slane %v390, 4
    %v392 = vadd.f32 %v390, %v391
    %v393 = vrot.slane %v392, 2
    %v394 = vadd.f32 %v392, %v393
    %v395 = vrot.slane %v394, 1
    %v396 = vadd.f32 %v394, %v395
    %v397 = vrcp.pop %v396
    %v398 = vmul.f32 %v389, %v397
    %v400 = vsel %vm378, %v398, 0
    %402 = vmatprep.subr.mxu0 0.0
    %403 = vmatpush1.msra.mxu0 %v286
    %404 = vmatprep.subr.mxu0 0.0
    %405 = vmatpush1.msra.mxu0 0.0
    %406 = vmatprep.subr.mxu0 0.0
    %407 = vmatpush1.msra.mxu0 0.0
    %408 = vmatprep.subr.mxu0 0.0
    %409 = vmatpush1.msra.mxu0 0.0
    %410 = vmatprep.subr.mxu0 0.0
    %411 = vmatpush1.msra.mxu0 0.0
    %412 = vmatprep.subr.mxu0 0.0
    %413 = vmatpush1.msra.mxu0 0.0
    %414 = vmatprep.subr.mxu0 0.0
    %415 = vmatpush1.msra.mxu0 0.0
    %416 = vmatprep.subr.mxu0 0.0
    %417 = vmatpush1.msra.mxu0 0.0
    %418 = vmatprep.subr.mxu0 0.0
    %419 = vmatpush1.msra.mxu0 0.0
    %420 = vmatprep.subr.mxu0 0.0
    %421 = vmatpush1.msra.mxu0 0.0
    %422 = vmatprep.subr.mxu0 0.0
    %423 = vmatpush1.msra.mxu0 0.0
    %424 = vmatprep.subr.mxu0 0.0
    %425 = vmatpush1.msra.mxu0 0.0
    %426 = vmatprep.subr.mxu0 0.0
    %427 = vmatpush1.msra.mxu0 0.0
    %428 = vmatprep.subr.mxu0 0.0
    %429 = vmatpush1.msra.mxu0 0.0
    %430 = vmatprep.subr.mxu0 0.0
    %431 = vmatpush1.msra.mxu0 0.0
    %432 = vmatprep.subr.mxu0 0.0
    %433 = vmatpush1.msra.mxu0 0.0
    %434 = vmatprep.subr.mxu0 0.0
    %435 = vmatpush1.msra.mxu0 0.0
    %436 = vmatprep.subr.mxu0 0.0
    %437 = vmatpush1.msra.mxu0 0.0
    %438 = vmatprep.subr.mxu0 0.0
    %439 = vmatpush1.msra.mxu0 0.0
    %440 = vmatprep.subr.mxu0 0.0
    %441 = vmatpush1.msra.mxu0 0.0
    %442 = vmatprep.subr.mxu0 0.0
    %443 = vmatpush1.msra.mxu0 0.0
    %444 = vmatprep.subr.mxu0 0.0
    %445 = vmatpush1.msra.mxu0 0.0
    %446 = vmatprep.subr.mxu0 0.0
    %447 = vmatpush1.msra.mxu0 0.0
    %448 = vmatprep.subr.mxu0 0.0
    %449 = vmatpush1.msra.mxu0 0.0
    %450 = vmatprep.subr.mxu0 0.0
    %451 = vmatpush1.msra.mxu0 0.0
    %452 = vmatprep.subr.mxu0 0.0
    %453 = vmatpush1.msra.mxu0 0.0
    %454 = vmatprep.subr.mxu0 0.0
    %455 = vmatpush1.msra.mxu0 0.0
    %456 = vmatprep.subr.mxu0 0.0
    %457 = vmatpush1.msra.mxu0 0.0
    %458 = vmatprep.subr.mxu0 0.0
    %459 = vmatpush1.msra.mxu0 0.0
    %460 = vmatprep.subr.mxu0 0.0
    %461 = vmatpush1.msra.mxu0 0.0
    %462 = vmatprep.subr.mxu0 0.0
    %463 = vmatpush1.msra.mxu0 0.0
    %464 = vmatprep.subr.mxu0 0.0
    %465 = vmatpush1.msra.mxu0 0.0
    %466 = vmatprep.mubr.f32.mxu0 0.0
    %467 = vmatmul.mubr.f32.gmra.mrb[0].mxu0 %v400
    %v468 = vpop.f32.mrb[0].mxu0
    %v469 = vadd.f32 0.0, %v468
    %v470 = vpop.f32.mrb[0].mxu0
    %471 = vdwg.mxu0
    %472 = vst.msk [vmem:[#allocation2] sm:$0xff] %vm299, %v469
    %v474 = vsel %vm299, %v119, 0
    %v477 = vsel %vm299, %v205, 0
    %479 = vmatprep.subr.mxu0 0.0
    %480 = vmatpush1.xpose.msra.mxu0 %v477
    %481 = vmatprep.subr.mxu0 0.0
    %482 = vmatpush1.xpose.msra.mxu0 0.0
    %483 = vmatprep.subr.mxu0 0.0
    %484 = vmatpush1.xpose.msra.mxu0 0.0
    %485 = vmatprep.subr.mxu0 0.0
    %486 = vmatpush1.xpose.msra.mxu0 0.0
    %487 = vmatprep.subr.mxu0 0.0
    %488 = vmatpush1.xpose.msra.mxu0 0.0
    %489 = vmatprep.subr.mxu0 0.0
    %490 = vmatpush1.xpose.msra.mxu0 0.0
    %491 = vmatprep.subr.mxu0 0.0
    %492 = vmatpush1.xpose.msra.mxu0 0.0
    %493 = vmatprep.subr.mxu0 0.0
    %494 = vmatpush1.xpose.msra.mxu0 0.0
    %495 = vmatprep.subr.mxu0 0.0
    %496 = vmatpush1.xpose.msra.mxu0 0.0
    %497 = vmatprep.subr.mxu0 0.0
    %498 = vmatpush1.xpose.msra.mxu0 0.0
    %499 = vmatprep.subr.mxu0 0.0
    %500 = vmatpush1.xpose.msra.mxu0 0.0
    %501 = vmatprep.subr.mxu0 0.0
    %502 = vmatpush1.xpose.msra.mxu0 0.0
    %503 = vmatprep.subr.mxu0 0.0
    %504 = vmatpush1.xpose.msra.mxu0 0.0
    %505 = vmatprep.subr.mxu0 0.0
    %506 = vmatpush1.xpose.msra.mxu0 0.0
    %507 = vmatprep.subr.mxu0 0.0
    %508 = vmatpush1.xpose.msra.mxu0 0.0
    %509 = vmatprep.subr.mxu0 0.0
    %510 = vmatpush1.xpose.msra.mxu0 0.0
    %511 = vmatprep.subr.mxu0 0.0
    %512 = vmatpush1.xpose.msra.mxu0 0.0
    %513 = vmatprep.subr.mxu0 0.0
    %514 = vmatpush1.xpose.msra.mxu0 0.0
    %515 = vmatprep.subr.mxu0 0.0
    %516 = vmatpush1.xpose.msra.mxu0 0.0
    %517 = vmatprep.subr.mxu0 0.0
    %518 = vmatpush1.xpose.msra.mxu0 0.0
    %519 = vmatprep.subr.mxu0 0.0
    %520 = vmatpush1.xpose.msra.mxu0 0.0
    %521 = vmatprep.subr.mxu0 0.0
    %522 = vmatpush1.xpose.msra.mxu0 0.0
    %523 = vmatprep.subr.mxu0 0.0
    %524 = vmatpush1.xpose.msra.mxu0 0.0
    %525 = vmatprep.subr.mxu0 0.0
    %526 = vmatpush1.xpose.msra.mxu0 0.0
    %527 = vmatprep.subr.mxu0 0.0
    %528 = vmatpush1.xpose.msra.mxu0 0.0
    %529 = vmatprep.subr.mxu0 0.0
    %530 = vmatpush1.xpose.msra.mxu0 0.0
    %531 = vmatprep.subr.mxu0 0.0
    %532 = vmatpush1.xpose.msra.mxu0 0.0
    %533 = vmatprep.subr.mxu0 0.0
    %534 = vmatpush1.xpose.msra.mxu0 0.0
    %535 = vmatprep.subr.mxu0 0.0
    %536 = vmatpush1.xpose.msra.mxu0 0.0
    %537 = vmatprep.subr.mxu0 0.0
    %538 = vmatpush1.xpose.msra.mxu0 0.0
    %539 = vmatprep.subr.mxu0 0.0
    %540 = vmatpush1.xpose.msra.mxu0 0.0
    %541 = vmatprep.subr.mxu0 0.0
    %542 = vmatpush1.xpose.msra.mxu0 0.0
    %543 = vmatprep.mubr.f32.mxu0 0.0
    %544 = vmatmul.mubr.f32.gmra.mrb[0].mxu0 %v474
    %v545 = vpop.f32.mrb[0].mxu0
    %v546 = vadd.f32 0.0, %v545
    %v547 = vpop.f32.mrb[0].mxu0
    %548 = vdwg.mxu0
    %v549 = vmul.f32 %v546, 0.25
    %v550 = vsel %vm298, -inf, %v549
    %v551 = vsel %vm378, %v550, -inf
    %v552 = vrot.slane %v551, 4
    %v553 = vmax.f32 %v551, %v552
    %v554 = vrot.slane %v553, 2
    %v555 = vmax.f32 %v553, %v554
    %v556 = vrot.slane %v555, 1
    %v557 = vmax.f32 %v555, %v556
    %v558 = vsub.f32 %v550, %v557
    %v559 = vmul.f32 %v558, 1.442695
    %v560 = vpow.pop %v559
    %v561 = vsel %vm298, 0.0, %v560
    %v562 = vsel %vm378, %v561, 0.0
    %v563 = vrot.slane %v562, 4
    %v564 = vadd.f32 %v562, %v563
    %v565 = vrot.slane %v564, 2
    %v566 = vadd.f32 %v564, %v565
    %v567 = vrot.slane %v566, 1
    %v568 = vadd.f32 %v566, %v567
    %v569 = vrcp.pop %v568
    %v570 = vmul.f32 %v561, %v569
    %v572 = vsel %vm378, %v570, 0
    %574 = vmatprep.subr.mxu0 0.0
    %575 = vmatpush1.msra.mxu0 %v291
    %576 = vmatprep.subr.mxu0 0.0
    %577 = vmatpush1.msra.mxu0 0.0
    %578 = vmatprep.subr.mxu0 0.0
    %579 = vmatpush1.msra.mxu0 0.0
    %580 = vmatprep.subr.mxu0 0.0
    %581 = vmatpush1.msra.mxu0 0.0
    %582 = vmatprep.subr.mxu0 0.0
    %583 = vmatpush1.msra.mxu0 0.0
    %584 = vmatprep.subr.mxu0 0.0
    %585 = vmatpush1.msra.mxu0 0.0
    %586 = vmatprep.subr.mxu0 0.0
    %587 = vmatpush1.msra.mxu0 0.0
    %588 = vmatprep.subr.mxu0 0.0
    %589 = vmatpush1.msra.mxu0 0.0
    %590 = vmatprep.subr.mxu0 0.0
    %591 = vmatpush1.msra.mxu0 0.0
    %592 = vmatprep.subr.mxu0 0.0
    %593 = vmatpush1.msra.mxu0 0.0
    %594 = vmatprep.subr.mxu0 0.0
    %595 = vmatpush1.msra.mxu0 0.0
    %596 = vmatprep.subr.mxu0 0.0
    %597 = vmatpush1.msra.mxu0 0.0
    %598 = vmatprep.subr.mxu0 0.0
    %599 = vmatpush1.msra.mxu0 0.0
    %600 = vmatprep.subr.mxu0 0.0
    %601 = vmatpush1.msra.mxu0 0.0
    %602 = vmatprep.subr.mxu0 0.0
    %603 = vmatpush1.msra.mxu0 0.0
    %604 = vmatprep.subr.mxu0 0.0
    %605 = vmatpush1.msra.mxu0 0.0
    %606 = vmatprep.subr.mxu0 0.0
    %607 = vmatpush1.msra.mxu0 0.0
    %608 = vmatprep.subr.mxu0 0.0
    %609 = vmatpush1.msra.mxu0 0.0
    %610 = vmatprep.subr.mxu0 0.0
    %611 = vmatpush1.msra.mxu0 0.0
    %612 = vmatprep.subr.mxu0 0.0
    %613 = vmatpush1.msra.mxu0 0.0
    %614 = vmatprep.subr.mxu0 0.0
    %615 = vmatpush1.msra.mxu0 0.0
    %616 = vmatprep.subr.mxu0 0.0
    %617 = vmatpush1.msra.mxu0 0.0
    %618 = vmatprep.subr.mxu0 0.0
    %619 = vmatpush1.msra.mxu0 0.0
    %620 = vmatprep.subr.mxu0 0.0
    %621 = vmatpush1.msra.mxu0 0.0
    %622 = vmatprep.subr.mxu0 0.0
    %623 = vmatpush1.msra.mxu0 0.0
    %624 = vmatprep.subr.mxu0 0.0
    %625 = vmatpush1.msra.mxu0 0.0
    %626 = vmatprep.subr.mxu0 0.0
    %627 = vmatpush1.msra.mxu0 0.0
    %628 = vmatprep.subr.mxu0 0.0
    %629 = vmatpush1.msra.mxu0 0.0
    %630 = vmatprep.subr.mxu0 0.0
    %631 = vmatpush1.msra.mxu0 0.0
    %632 = vmatprep.subr.mxu0 0.0
    %633 = vmatpush1.msra.mxu0 0.0
    %634 = vmatprep.subr.mxu0 0.0
    %635 = vmatpush1.msra.mxu0 0.0
    %636 = vmatprep.subr.mxu0 0.0
    %637 = vmatpush1.msra.mxu0 0.0
    %638 = vmatprep.mubr.f32.mxu0 0.0
    %639 = vmatmul.mubr.f32.gmra.mrb[0].mxu0 %v572
    %v640 = vpop.f32.mrb[0].mxu0
    %v641 = vadd.f32 0.0, %v640
    %v642 = vpop.f32.mrb[0].mxu0
    %643 = vdwg.mxu0
    %644 = vst.msk [vmem:[#allocation2 + $0x8] sm:$0xff] %vm299, %v641
    // Predicated region
    $region30: #{tpu_custom_call.1} parent=1 // pred_check
      _
    $region31: #{tpu_custom_call.1} parent=1 // pred_check_branch
      %646 = sbr.rel (0) target = $region33
    $region32: #{tpu_custom_call.1} parent=1 // pred_region
      %s648 = ssub.s32 256, 256
      %649 = vsyncadd [#allocation3], %s648
      %s650 = sshll.u32 [#allocation2], 4
      %s651 = int_to_ptr.vmem [resolvable:$true] %s650
      %656 = dma.vmem_to_hbm [thread:$0]  %s651, 256, %s7, [#allocation3], 128, 128, 8
    $region33: #{tpu_custom_call.1} parent=1 // pred_fallthru
      _
    // Predicated region
    $region34: #{tpu_custom_call.1} parent=1 // pred_check
      _
    $region35: #{tpu_custom_call.1} parent=1 // pred_check_branch
      %658 = sbr.rel (0) target = $region37
    $region36: #{tpu_custom_call.1} parent=1 // pred_region
      %659 = dma.done [#allocation3], 256
    $region37: #{tpu_custom_call.1} parent=1 // pred_fallthru
      _
    %660 = vsyncpa [#allocation3], 1

</llo_original>
